<compile_context>
chip_gen: v7x
topology: tpu7x:2x2x1
jax: 0.10.0
libtpu: 0.0.40
codegen_flags: <defaults>
</compile_context>

<pallas_src>
import functools

import jax
import jax.numpy as jnp
from jax.experimental import pallas as pl
from jax.experimental.pallas import tpu as pltpu


def _rmsnorm_kernel(x_ref, w_ref, o_ref, *, eps):
    # x_ref: (tile_rows, D) in input dtype; w_ref: (1, D) float32
    x = x_ref[...].astype(jnp.float32)
    ms = jnp.mean(x * x, axis=-1, keepdims=True)
    inv = jax.lax.rsqrt(ms + eps)          # EUP rsqrt
    y = x * inv * w_ref[...]
    o_ref[...] = y.astype(o_ref.dtype)


def _round_up(x: int, m: int) -> int:
    return ((x + m - 1) // m) * m


def _choose_tile_rows(n_rows: int, dim: int, in_bytes: int, out_bytes: int):
    """Largest row tile that fits a ~32 MiB double-buffered VMEM working set."""
    # Sublane packing: 8 rows for 32-bit, 16 for 16-bit (bf16), 32 for 8-bit.
    sublane = max(8, 32 // max(1, in_bytes))
    budget = 32 << 20                                # safe across v5e/v6e/v7x
    per_row = 2 * dim * (in_bytes + out_bytes)       # double-buffered in + out
    tm = max(sublane, budget // max(1, per_row))
    tm = min(tm, 1024)
    # Never bigger than the problem itself (rounded up to a full sublane tile).
    tm = min(tm, _round_up(n_rows, sublane))
    # Keep at least 2 grid steps when possible so v7x's 2 TCs both get work.
    if n_rows > sublane and n_rows <= tm:
        tm = _round_up(pl.cdiv(n_rows, 2), sublane)
    tm = max(sublane, (tm // sublane) * sublane)     # align to sublane multiple
    return tm


def rmsnorm(x, weight, eps: float = 1e-5, tile_rows: int | None = None):
    """RMSNorm over the last axis of x.

    x: (..., dim) any float dtype; weight: (dim,) — math in float32 exactly like
    the PyTorch module, output cast back to x.dtype.
    """
    orig_shape = x.shape
    dim = orig_shape[-1]
    assert weight.shape == (dim,)

    x2d = x.reshape(-1, dim)
    n_rows = x2d.shape[0]

    in_bytes = jnp.dtype(x.dtype).itemsize
    out_bytes = in_bytes
    if tile_rows is None:
        tm = _choose_tile_rows(n_rows, dim, in_bytes, out_bytes)
    else:
        sublane = max(8, 32 // max(1, in_bytes))
        tm = max(sublane, (min(tile_rows, _round_up(n_rows, sublane)) // sublane) * sublane)

    w2d = weight.astype(jnp.float32).reshape(1, dim)

    grid = (pl.cdiv(n_rows, tm),)   # ragged last block handled by Pallas masking

    # Explicit VMEM limit so the larger tiles compile on all chips
    # (default scoped limit: 16 MiB v5e / 32 MiB v6e,v7x).
    vmem_needed = 2 * tm * dim * in_bytes + 2 * tm * dim * out_bytes + dim * 4
    vmem_limit = int(min(max(vmem_needed + (4 << 20), 16 << 20), 48 << 20))

    cost = pl.CostEstimate(
        flops=3 * n_rows * dim,
        transcendentals=n_rows,
        bytes_accessed=n_rows * dim * (in_bytes + out_bytes) + dim * 4,
    )

    out = pl.pallas_call(
        functools.partial(_rmsnorm_kernel, eps=eps),
        out_shape=jax.ShapeDtypeStruct((n_rows, dim), x.dtype),
        grid_spec=pltpu.PrefetchScalarGridSpec(
            num_scalar_prefetch=0,
            grid=grid,
            in_specs=[
                pl.BlockSpec((tm, dim), lambda i: (i, 0)),
                pl.BlockSpec((1, dim), lambda i: (0, 0)),
            ],
            out_specs=pl.BlockSpec((tm, dim), lambda i: (i, 0)),
        ),
        compiler_params=pltpu.CompilerParams(
            dimension_semantics=("parallel",),
            vmem_limit_bytes=vmem_limit,
        ),
        cost_estimate=cost,
    )(x2d, w2d)

    return out.reshape(orig_shape)


def rmsnorm_reference(x, weight, eps: float = 1e-5):
    xf = x.astype(jnp.float32)
    out = xf * jax.lax.rsqrt(jnp.mean(jnp.square(xf), axis=-1, keepdims=True) + eps)
    return (out * weight.astype(jnp.float32)).astype(x.dtype)


def _check(x, weight, eps, atol, rtol):
    out = jax.block_until_ready(rmsnorm(x, weight, eps=eps))
    ref = rmsnorm_reference(x, weight, eps=eps)
    assert out.shape == x.shape and out.dtype == x.dtype
    assert jnp.allclose(out.astype(jnp.float32), ref.astype(jnp.float32),
                        atol=atol, rtol=rtol), "mismatch vs reference"


if __name__ == "__main__":
    key = jax.random.PRNGKey(0)
    k1, k2, k3 = jax.random.split(key, 1)[0], *jax.random.split(key, 2)

    eps = 1e-5

    # Lane-dense case (dim = 128), bf16 input — the fast path.
    dim = 128
    w = jnp.ones((dim,), jnp.float32) + 0.01 * jnp.arange(dim, dtype=jnp.float32)
    x = jax.random.normal(k2, (2, 8, dim), dtype=jnp.bfloat16)
    _check(x, w, eps, atol=2e-2, rtol=2e-2)

    # Row count not a multiple of the tile (3*7 = 21 rows), f32 input —
    # exercises the ragged edge-block masking (no host-side pad/slice).
    x_rag = jax.random.normal(k3, (3, 7, dim), dtype=jnp.float32)
    _check(x_rag, w, eps, atol=1e-5, rtol=1e-5)

    # Small dim (32) like the module demo — correct, just uses masked stores.
    dim_s = 32
    w_s = jnp.ones((dim_s,), jnp.float32) + 0.01 * jnp.arange(dim_s, dtype=jnp.float32)
    x_s = jax.random.normal(k2, (2, 8, dim_s), dtype=jnp.bfloat16)
    _check(x_s, w_s, eps, atol=2e-2, rtol=2e-2)

    print("KERNEL_OK")
</pallas_src>

<mosaic_0001>
module attributes {stable_mosaic.version = 11 : i64} {
  func.func @_rmsnorm_kernel(%arg0: i32, %arg1: memref<16x128xbf16, #tpu.memory_space<vmem>>, %arg2: memref<1x128xf32, #tpu.memory_space<vmem>>, %arg3: memref<16x128xbf16, #tpu.memory_space<vmem>>) attributes {dimension_semantics = [#tpu.dimension_semantics<parallel>], iteration_bounds = array<i64: 1>, scalar_prefetch = 0 : i64, scratch_operands = 0 : i64, tpu.core_type = #tpu.core_type<tc>, window_params = [{transform_indices = @transform_0, window_bounds = array<i64: 16, 128>}, {pipeline_mode = #tpu.pipeline_mode<synchronous>, transform_indices = @transform_1, window_bounds = array<i64: 1, 128>}, {transform_indices = @transform_2, window_bounds = array<i64: 16, 128>}]} {
    %c0 = arith.constant 0 : index
    %c0_0 = arith.constant 0 : index
    %0 = vector.load %arg1[%c0, %c0_0] : memref<16x128xbf16, #tpu.memory_space<vmem>>, vector<16x128xbf16>
    %1 = arith.extf %0 : vector<16x128xbf16> to vector<16x128xf32>
    %2 = arith.mulf %1, %1 : vector<16x128xf32>
    %cst = arith.constant dense<0.000000e+00> : vector<16xf32>
    %3 = vector.multi_reduction <add>, %2, %cst [1] : vector<16x128xf32> to vector<16xf32>
    %4 = vector.shape_cast %3 : vector<16xf32> to vector<16x1xf32>
    %cst_1 = arith.constant 1.280000e+02 : f32
    %5 = vector.broadcast %cst_1 : f32 to vector<16x1xf32>
    %6 = arith.divf %4, %5 : vector<16x1xf32>
    %cst_2 = arith.constant 9.99999974E-6 : f32
    %7 = vector.broadcast %cst_2 : f32 to vector<16x1xf32>
    %8 = arith.addf %6, %7 : vector<16x1xf32>
    %9 = math.rsqrt %8 : vector<16x1xf32>
    %10 = vector.broadcast %9 : vector<16x1xf32> to vector<16x128xf32>
    %11 = arith.mulf %1, %10 : vector<16x128xf32>
    %c0_3 = arith.constant 0 : index
    %c0_4 = arith.constant 0 : index
    %12 = vector.load %arg2[%c0_3, %c0_4] : memref<1x128xf32, #tpu.memory_space<vmem>>, vector<1x128xf32>
    %13 = vector.broadcast %12 : vector<1x128xf32> to vector<16x128xf32>
    %14 = arith.mulf %11, %13 : vector<16x128xf32>
    %15 = arith.truncf %14 : vector<16x128xf32> to vector<16x128xbf16>
    %c0_5 = arith.constant 0 : index
    %c0_6 = arith.constant 0 : index
    %16 = vector.load %arg3[%c0_5, %c0_6] : memref<16x128xbf16, #tpu.memory_space<vmem>>, vector<16x128xbf16>
    tpu.vector_store %arg3[%c0_5, %c0_6], %15 {strides = array<i32>} : memref<16x128xbf16, #tpu.memory_space<vmem>>, vector<16x128xbf16>,
    return
  }
  func.func @transform_0(%arg0: i32) -> (i32, i32) {
    %c0_i32 = arith.constant 0 : i32
    %c0_i32_0 = arith.constant 0 : i32
    return %arg0, %c0_i32 : i32, i32
  }
  func.func @transform_1(%arg0: i32) -> (i32, i32) {
    %c0_i32 = arith.constant 0 : i32
    %c0_i32_0 = arith.constant 0 : i32
    %c0_i32_1 = arith.constant 0 : i32
    return %c0_i32, %c0_i32_0 : i32, i32
  }
  func.func @transform_2(%arg0: i32) -> (i32, i32) {
    %c0_i32 = arith.constant 0 : i32
    %c0_i32_0 = arith.constant 0 : i32
    return %arg0, %c0_i32 : i32, i32
  }
}

</mosaic_0001>

<llo_original>
// kernel: tpu_custom_call.1
$region0: #{tpu_custom_call.1}
  #allocation0 [shape = 'u32[]', space=smem, size = 0x4, offset = 0x4, fixed_abs, tag = 'smem constant byte address 0x4 - core index']
  #allocation1 [shape = 'u32[144,128]{1,0:T(1,128)}', space=vmem, size = 0x12000, scoped, tag = 'internal scratch']
  %s0 = inlined_call_operand.hbm [shape: bf16[16,128], index: 0, kind: input, shape index: {}]
  %s1 = inlined_call_operand.vmem [shape: f32[1,128], index: 1, kind: input, shape index: {}]
  %s2 = inlined_call_operand.hbm [shape: bf16[16,128], index: 2, kind: output, shape index: {}]
  %s3 = sld [smem:[#allocation0]]
  $region22: #{tpu_custom_call.1} parent=0
    _
  %s5 = ssub.s32 1, %s3
  %s6 = scalar_select 0, %s5, %s3
  $region1: #{tpu_custom_call.1} parent=0
    #allocation2 [shape = 'u8[4096]{0}', space=vmem, size = 0x1000, scoped, tag = 'input window, operand 0, single buffered']
    #allocation3 [shape = 's32[1]{0}', space=sflag, size = 0x4, scoped, tag = 'scoped memory for tpu_custom_call.1']
    #allocation4 [shape = 's32[1]{0}', space=sflag, size = 0x4, scoped, tag = 'scoped memory for tpu_custom_call.1']
    #allocation5 [shape = 'u8[4096]{0}', space=vmem, size = 0x1000, scoped, tag = 'output window, operand 0, single buffered']
    %7 = vsyncpa [#allocation3], 0
    %8 = vsyncpa [#allocation4], 0
    // Predicated region
    $region2: #{tpu_custom_call.1} parent=1 // pred_check
      _
    $region3: #{tpu_custom_call.1} parent=1 // pred_check_branch
      %10 = sbr.rel (0) target = $region5
    $region4: #{tpu_custom_call.1} parent=1 // pred_region
      %s12 = ssub.s32 128, 128
      %13 = vsyncadd [#allocation3], %s12
      %s14 = sshll.u32 [#allocation2], 4
      %s15 = int_to_ptr.vmem [resolvable:$true] %s14
      %20 = dma.hbm_to_vmem [thread:$0]  %s0, 128, %s15, [#allocation3], 64, 64, 4
    $region5: #{tpu_custom_call.1} parent=1 // pred_fallthru
      _
    // Predicated region
    $region6: #{tpu_custom_call.1} parent=1 // pred_check
      _
    $region7: #{tpu_custom_call.1} parent=1 // pred_check_branch
      %22 = sbr.rel (0) target = $region9
    $region8: #{tpu_custom_call.1} parent=1 // pred_region
      _
    $region9: #{tpu_custom_call.1} parent=1 // pred_fallthru
      _
    // Predicated region
    $region10: #{tpu_custom_call.1} parent=1 // pred_check
      _
    $region11: #{tpu_custom_call.1} parent=1 // pred_check_branch
      %24 = sbr.rel (0) target = $region13
    $region12: #{tpu_custom_call.1} parent=1 // pred_region
      %25 = dma.done [#allocation3], 128
    $region13: #{tpu_custom_call.1} parent=1 // pred_fallthru
      _
    %v26 = vld [vmem:[#allocation2] sm:$0xf]
    %v27 = vld [vmem:[#allocation2 + $0x4] sm:$0xf]
    %v28 = vunpack.c.l.bf16 %v26
    %v29 = vunpack.c.l.bf16 %v27
    %v30 = vmul.f32 %v28, %v28
    %v31 = vmul.f32 %v29, %v29
    %32 = vadd.xlane.f32.xlu0 %v30
    %v33 = vpop.xlane.xlu0 %32
    %34 = vadd.xlane.f32.xlu0 %v31
    %v35 = vpop.xlane.xlu0 %34
    %v36 = vrcp.pop 128.0
    %v37 = vmul.f32 %v33, %v36
    %v38 = vmul.f32 %v35, %v36
    %v39 = vadd.f32 %v37, 1e-05
    %v40 = vadd.f32 %v38, 1e-05
    %v41 = vrsqrt.pop %v39
    %v42 = vrsqrt.pop %v40
    %v43 = vmul.f32 %v28, %v41
    %v44 = vmul.f32 %v29, %v42
    %v45 = vld [vmem:[%s1] sm:$0x1]
    %v47 = vlaneseq
    %v48 = vshrl.u32 %v47, 7
    %v49 = vsub.s32 0, %v48
    %v50 = vrot.slane %v45, %v49
    %v52 = vmul.f32 %v43, %v50
    %v53 = vmul.f32 %v44, %v50
    %v54 = vpack.c.bf16 %v53, %v52
    %v56 = vunpack.c.l.b16 %v54
    %v57 = vunpack.c.h.b16 %v54
    %v58 = vpack.c.b16 %v56, %v56
    %v59 = vpack.c.b16 %v57, %v57
    %62 = vst [vmem:[#allocation5] sm:$0xf] %v58
    %63 = vst [vmem:[#allocation5 + $0x4] sm:$0xf] %v59
    // Predicated region
    $region14: #{tpu_custom_call.1} parent=1 // pred_check
      _
    $region15: #{tpu_custom_call.1} parent=1 // pred_check_branch
      %65 = sbr.rel (0) target = $region17
    $region16: #{tpu_custom_call.1} parent=1 // pred_region
      %s67 = ssub.s32 128, 128
      %68 = vsyncadd [#allocation4], %s67
      %s69 = sshll.u32 [#allocation5], 4
      %s70 = int_to_ptr.vmem [resolvable:$true] %s69
      %75 = dma.vmem_to_hbm [thread:$0]  %s70, 128, %s2, [#allocation4], 64, 64, 4
    $region17: #{tpu_custom_call.1} parent=1 // pred_fallthru
      _
    // Predicated region
    $region18: #{tpu_custom_call.1} parent=1 // pred_check
      _
    $region19: #{tpu_custom_call.1} parent=1 // pred_check_branch
      %77 = sbr.rel (0) target = $region21
    $region20: #{tpu_custom_call.1} parent=1 // pred_region
      %78 = dma.done [#allocation4], 128
    $region21: #{tpu_custom_call.1} parent=1 // pred_fallthru
      _
    %79 = vsyncpa [#allocation3], 1
    %80 = vsyncpa [#allocation4], 1

</llo_original>
